<compile_context>
chip_gen: v7x
topology: tpu7x:2x2x1
jax: 0.10.0
libtpu: 0.0.40
codegen_flags: <defaults>
</compile_context>

<pallas_src>
import functools

import jax
import jax.numpy as jnp
from jax.experimental import pallas as pl
from jax.experimental.pallas import tpu as pltpu


def _round_up(n, m):
    return ((n + m - 1) // m) * m


# ---------------------------------------------------------------------------
# Kernel: one (batch, time-tile) block; carries cumulative stats across T tiles.
# ---------------------------------------------------------------------------
def _cgn_kernel(eps, n_feat, x_ref, m_ref, tri_ref, w_ref, cmask_ref,
                o_ref, cs_ref, cn_ref, cq_ref):
    t_idx = pl.program_id(1)

    # Reset the cumulative carries at the start of every batch element.
    @pl.when(t_idx == 0)
    def _():
        cs_ref[...] = jnp.zeros_like(cs_ref)   # cumulative sum of x
        cn_ref[...] = jnp.zeros_like(cn_ref)   # cumulative valid-element count
        cq_ref[...] = jnp.zeros_like(cq_ref)   # cumulative sum of squared diffs

    x = x_ref[...].astype(jnp.float32)         # (Tt, Gp)  padded lanes are 0
    m = m_ref[...].astype(jnp.float32)         # (Tt, 1)   1 = valid time step
    tri = tri_ref[...]                         # (Tt, Tt)  lower-triangular ones
    cmask = cmask_ref[...]                     # (1, Gp)   1 = real feature lane
    tt = x.shape[0]

    # Per-time-step reductions over the feature/channel axis.
    s_t = jnp.sum(x, axis=-1, keepdims=True)   # (Tt, 1)
    n_t = m * n_feat                           # (Tt, 1) valid elements this step

    # In-tile inclusive cumsum via lower-triangular matmul + carry from prior tiles.
    cum_s = jnp.dot(tri, s_t, preferred_element_type=jnp.float32) + cs_ref[...]
    cum_n = jnp.dot(tri, n_t, preferred_element_type=jnp.float32) + cn_ref[...]
    safe_n = jnp.maximum(cum_n, 1.0)
    mean = cum_s / safe_n                      # (Tt, 1)

    d = x - mean
    dm = d * cmask                             # exclude padded lanes from the stats
    sq_t = jnp.sum(dm * dm, axis=-1, keepdims=True)
    cum_q = jnp.dot(tri, sq_t, preferred_element_type=jnp.float32) + cq_ref[...]
    var = cum_q / safe_n

    out = d * jax.lax.rsqrt(var + eps) * w_ref[...] * m
    o_ref[...] = out.astype(o_ref.dtype)

    # Update carries with this tile's running totals (last row of each cumsum).
    cs_ref[...] = cum_s[tt - 1:tt, :]
    cn_ref[...] = cum_n[tt - 1:tt, :]
    cq_ref[...] = cum_q[tt - 1:tt, :]


# ---------------------------------------------------------------------------
# Wrapper: flatten/pad, tile time, run the fused kernel, unpad/reshape.
# ---------------------------------------------------------------------------
def cumulative_group_norm(x, mask, weight, *, eps=1e-3, t_tile=256):
    """x: (B, T, *feature_dims, C); mask: (B, T, 1, 1) or None; weight: (C,)."""
    orig_shape = x.shape
    orig_dtype = x.dtype
    B, T = x.shape[0], x.shape[1]
    C = x.shape[-1]
    G = 1
    for d in x.shape[2:]:
        G *= d
    F = G // C

    xf = x.reshape(B, T, G)
    if mask is None:
        mf = jnp.ones((B, T, 1), jnp.float32)
    else:
        mf = mask.reshape(B, T, 1).astype(jnp.float32)

    # Lane-dense last dim (multiple of 128 => unmasked vector stores).
    Gp = _round_up(G, 128)
    # Sublane-aligned time tile; carries make the T-tiling exact.
    Tt = min(_round_up(t_tile, 8), _round_up(T, 8))
    Tp = _round_up(T, Tt)
    NT = Tp // Tt

    xp = jnp.pad(xf, ((0, 0), (0, Tp - T), (0, Gp - G)))
    mp = jnp.pad(mf, ((0, 0), (0, Tp - T), (0, 0)))

    # Per-channel scale broadcast over the flattened feature axis (c varies fastest).
    w_flat = jnp.tile(weight.astype(jnp.float32).reshape(1, C), (1, F))     # (1, G)
    w_p = jnp.pad(w_flat, ((0, 0), (0, Gp - G)))                            # (1, Gp)
    col_mask = jnp.pad(jnp.ones((1, G), jnp.float32), ((0, 0), (0, Gp - G)))

    tri = jnp.tril(jnp.ones((Tt, Tt), jnp.float32))

    out_p = pl.pallas_call(
        functools.partial(_cgn_kernel, float(eps), float(G)),
        out_shape=jax.ShapeDtypeStruct((B, Tp, Gp), orig_dtype),
        grid=(B, NT),
        in_specs=[
            pl.BlockSpec((None, Tt, Gp), lambda b, t: (b, t, 0)),   # x
            pl.BlockSpec((None, Tt, 1), lambda b, t: (b, t, 0)),    # time mask
            pl.BlockSpec((Tt, Tt), lambda b, t: (0, 0)),            # lower-tri ones
            pl.BlockSpec((1, Gp), lambda b, t: (0, 0)),             # flattened weight
            pl.BlockSpec((1, Gp), lambda b, t: (0, 0)),             # lane validity
        ],
        out_specs=pl.BlockSpec((None, Tt, Gp), lambda b, t: (b, t, 0)),
        scratch_shapes=[
            pltpu.VMEM((1, 1), jnp.float32),   # carry: cumulative sum
            pltpu.VMEM((1, 1), jnp.float32),   # carry: cumulative count
            pltpu.VMEM((1, 1), jnp.float32),   # carry: cumulative sq-diff
        ],
        compiler_params=pltpu.CompilerParams(
            dimension_semantics=("parallel", "arbitrary")),
    )(xp, mp, tri, w_p, col_mask)

    return out_p[:, :T, :G].reshape(orig_shape)


# ---------------------------------------------------------------------------
# Pure-JAX reference (direct transcription of the PyTorch forward).
# ---------------------------------------------------------------------------
def reference(x, mask, weight, eps):
    x32 = x.astype(jnp.float32)
    red = tuple(range(2, x.ndim))
    if mask is None:
        mcalc = jnp.ones_like(x32)
    else:
        mcalc = jnp.broadcast_to(mask.astype(jnp.float32), x.shape)
    cum_sum = jnp.cumsum(jnp.sum(x32, axis=red, keepdims=True), axis=1)
    cum_cnt = jnp.cumsum(jnp.sum(mcalc, axis=red, keepdims=True), axis=1)
    safe = jnp.maximum(cum_cnt, 1.0)
    mean = cum_sum / safe
    cum_sq = jnp.cumsum(jnp.sum((x32 - mean) ** 2, axis=red, keepdims=True), axis=1)
    var = cum_sq / safe
    out = (x32 - mean) * jax.lax.rsqrt(var + eps)
    scale_shape = (1,) * (x.ndim - 1) + (weight.shape[0],)
    out = out * weight.astype(jnp.float32).reshape(scale_shape)
    out = out * mcalc
    return out.astype(x.dtype)


if __name__ == "__main__":
    B, T, F, C = 2, 16, 4, 8           # x: [B, T, feature_dim, C]
    EPS = 1e-3
    key = jax.random.PRNGKey(0)
    kx, kw = jax.random.split(key)
    x = jax.random.normal(kx, (B, T, F, C), dtype=jnp.float32)
    weight = 1.0 + 0.1 * jax.random.normal(kw, (C,), dtype=jnp.float32)

    # mask: (B, T, 1, 1); 1.0 = valid, 0.0 = padded (batch 1 padded from t=12)
    mask = jnp.ones((B, T, 1, 1), dtype=jnp.float32)
    mask = mask.at[1, 12:].set(0.0)

    # t_tile=8 exercises the cross-tile cumulative carry path (grid = (2, 2)).
    out = cumulative_group_norm(x, mask, weight, eps=EPS, t_tile=8)
    out = jax.block_until_ready(out)
    ref = reference(x, mask, weight, EPS)
    assert out.shape == x.shape
    err = float(jnp.max(jnp.abs(out - ref)))
    assert err < 1e-4, f"masked-path mismatch vs reference: {err}"

    # mask=None path (all elements valid).
    out2 = jax.block_until_ready(cumulative_group_norm(x, None, weight, eps=EPS, t_tile=8))
    ref2 = reference(x, None, weight, EPS)
    err2 = float(jnp.max(jnp.abs(out2 - ref2)))
    assert err2 < 1e-4, f"unmasked-path mismatch vs reference: {err2}"

    print("KERNEL_OK")
</pallas_src>

<mosaic_0001>
module attributes {stable_mosaic.version = 11 : i64} {
  func.func @_cgn_kernel(%arg0: i32, %arg1: i32, %arg2: memref<1x8x128xf32, #tpu.memory_space<vmem>>, %arg3: memref<1x8x1xf32, #tpu.memory_space<vmem>>, %arg4: memref<8x8xf32, #tpu.memory_space<vmem>>, %arg5: memref<1x128xf32, #tpu.memory_space<vmem>>, %arg6: memref<1x128xf32, #tpu.memory_space<vmem>>, %arg7: memref<1x8x128xf32, #tpu.memory_space<vmem>>, %arg8: memref<1x1xf32, #tpu.memory_space<vmem>>, %arg9: memref<1x1xf32, #tpu.memory_space<vmem>>, %arg10: memref<1x1xf32, #tpu.memory_space<vmem>>) attributes {dimension_semantics = [#tpu.dimension_semantics<parallel>, #tpu.dimension_semantics<arbitrary>], iteration_bounds = array<i64: 2, 2>, scalar_prefetch = 0 : i64, scratch_operands = 3 : i64, tpu.core_type = #tpu.core_type<tc>, window_params = [{transform_indices = @transform_0, window_bounds = array<i64: 1, 8, 128>}, {transform_indices = @transform_1, window_bounds = array<i64: 1, 8, 1>}, {pipeline_mode = #tpu.pipeline_mode<synchronous>, transform_indices = @transform_2, window_bounds = array<i64: 8, 8>}, {pipeline_mode = #tpu.pipeline_mode<synchronous>, transform_indices = @transform_3, window_bounds = array<i64: 1, 128>}, {pipeline_mode = #tpu.pipeline_mode<synchronous>, transform_indices = @transform_4, window_bounds = array<i64: 1, 128>}, {transform_indices = @transform_5, window_bounds = array<i64: 1, 8, 128>}]} {
    %c0_i32 = arith.constant 0 : i32
    %0 = arith.cmpi eq, %arg1, %c0_i32 : i32
    %1 = arith.extui %0 : i1 to i32
    %c0_i32_0 = arith.constant 0 : i32
    %2 = arith.cmpi ne, %1, %c0_i32_0 : i32
    scf.if %2 {
      %cst_34 = arith.constant 0.000000e+00 : f32
      %55 = vector.broadcast %cst_34 : f32 to vector<1x1xf32>
      %c0_35 = arith.constant 0 : index
      %c0_36 = arith.constant 0 : index
      %56 = vector.load %arg8[%c0_35, %c0_36] : memref<1x1xf32, #tpu.memory_space<vmem>>, vector<1x1xf32>
      tpu.vector_store %arg8[%c0_35, %c0_36], %55 {strides = array<i32>} : memref<1x1xf32, #tpu.memory_space<vmem>>, vector<1x1xf32>,
      %cst_37 = arith.constant 0.000000e+00 : f32
      %57 = vector.broadcast %cst_37 : f32 to vector<1x1xf32>
      %c0_38 = arith.constant 0 : index
      %c0_39 = arith.constant 0 : index
      %58 = vector.load %arg9[%c0_38, %c0_39] : memref<1x1xf32, #tpu.memory_space<vmem>>, vector<1x1xf32>
      tpu.vector_store %arg9[%c0_38, %c0_39], %57 {strides = array<i32>} : memref<1x1xf32, #tpu.memory_space<vmem>>, vector<1x1xf32>,
      %cst_40 = arith.constant 0.000000e+00 : f32
      %59 = vector.broadcast %cst_40 : f32 to vector<1x1xf32>
      %c0_41 = arith.constant 0 : index
      %c0_42 = arith.constant 0 : index
      %60 = vector.load %arg10[%c0_41, %c0_42] : memref<1x1xf32, #tpu.memory_space<vmem>>, vector<1x1xf32>
      tpu.vector_store %arg10[%c0_41, %c0_42], %59 {strides = array<i32>} : memref<1x1xf32, #tpu.memory_space<vmem>>, vector<1x1xf32>,
    } else {
    }
    %c0 = arith.constant 0 : index
    %c0_1 = arith.constant 0 : index
    %c0_2 = arith.constant 0 : index
    %3 = vector.load %arg2[%c0, %c0_1, %c0_2] : memref<1x8x128xf32, #tpu.memory_space<vmem>>, vector<1x8x128xf32>
    %4 = vector.shape_cast %3 : vector<1x8x128xf32> to vector<8x128xf32>
    %c0_3 = arith.constant 0 : index
    %c0_4 = arith.constant 0 : index
    %c0_5 = arith.constant 0 : index
    %5 = vector.load %arg3[%c0_3, %c0_4, %c0_5] : memref<1x8x1xf32, #tpu.memory_space<vmem>>, vector<1x8x1xf32>
    %6 = vector.shape_cast %5 : vector<1x8x1xf32> to vector<8x1xf32>
    %c0_6 = arith.constant 0 : index
    %c0_7 = arith.constant 0 : index
    %7 = vector.load %arg4[%c0_6, %c0_7] : memref<8x8xf32, #tpu.memory_space<vmem>>, vector<8x8xf32>
    %c0_8 = arith.constant 0 : index
    %c0_9 = arith.constant 0 : index
    %8 = vector.load %arg6[%c0_8, %c0_9] : memref<1x128xf32, #tpu.memory_space<vmem>>, vector<1x128xf32>
    %cst = arith.constant dense<0.000000e+00> : vector<8xf32>
    %9 = vector.multi_reduction <add>, %4, %cst [1] : vector<8x128xf32> to vector<8xf32>
    %10 = vector.shape_cast %9 : vector<8xf32> to vector<8x1xf32>
    %cst_10 = arith.constant 3.200000e+01 : f32
    %11 = vector.broadcast %cst_10 : f32 to vector<8x1xf32>
    %12 = arith.mulf %6, %11 : vector<8x1xf32>
    %cst_11 = arith.constant dense<0.000000e+00> : vector<8x1xf32>
    %13 = tpu.matmul %7, %10, %cst_11 {dimension_numbers = #tpu.dot_dimension_numbers<[1], [0], [0], [1], [0, 0, 1, 1], [], []>} : vector<8x8xf32>, vector<8x1xf32>, vector<8x1xf32> -> vector<8x1xf32>
    %c0_12 = arith.constant 0 : index
    %c0_13 = arith.constant 0 : index
    %14 = vector.load %arg8[%c0_12, %c0_13] : memref<1x1xf32, #tpu.memory_space<vmem>>, vector<1x1xf32>
    %15 = vector.broadcast %14 : vector<1x1xf32> to vector<8x1xf32>
    %16 = arith.addf %13, %15 : vector<8x1xf32>
    %cst_14 = arith.constant dense<0.000000e+00> : vector<8x1xf32>
    %17 = tpu.matmul %7, %12, %cst_14 {dimension_numbers = #tpu.dot_dimension_numbers<[1], [0], [0], [1], [0, 0, 1, 1], [], []>} : vector<8x8xf32>, vector<8x1xf32>, vector<8x1xf32> -> vector<8x1xf32>
    %c0_15 = arith.constant 0 : index
    %c0_16 = arith.constant 0 : index
    %18 = vector.load %arg9[%c0_15, %c0_16] : memref<1x1xf32, #tpu.memory_space<vmem>>, vector<1x1xf32>
    %19 = vector.broadcast %18 : vector<1x1xf32> to vector<8x1xf32>
    %20 = arith.addf %17, %19 : vector<8x1xf32>
    %cst_17 = arith.constant 1.000000e+00 : f32
    %21 = vector.broadcast %cst_17 : f32 to vector<8x1xf32>
    %22 = arith.maximumf %20, %21 : vector<8x1xf32>
    %23 = arith.divf %16, %22 : vector<8x1xf32>
    %24 = vector.broadcast %23 : vector<8x1xf32> to vector<8x128xf32>
    %25 = arith.subf %4, %24 : vector<8x128xf32>
    %26 = vector.broadcast %8 : vector<1x128xf32> to vector<8x128xf32>
    %27 = arith.mulf %25, %26 : vector<8x128xf32>
    %28 = arith.mulf %27, %27 : vector<8x128xf32>
    %cst_18 = arith.constant dense<0.000000e+00> : vector<8xf32>
    %29 = vector.multi_reduction <add>, %28, %cst_18 [1] : vector<8x128xf32> to vector<8xf32>
    %30 = vector.shape_cast %29 : vector<8xf32> to vector<8x1xf32>
    %cst_19 = arith.constant dense<0.000000e+00> : vector<8x1xf32>
    %31 = tpu.matmul %7, %30, %cst_19 {dimension_numbers = #tpu.dot_dimension_numbers<[1], [0], [0], [1], [0, 0, 1, 1], [], []>} : vector<8x8xf32>, vector<8x1xf32>, vector<8x1xf32> -> vector<8x1xf32>
    %c0_20 = arith.constant 0 : index
    %c0_21 = arith.constant 0 : index
    %32 = vector.load %arg10[%c0_20, %c0_21] : memref<1x1xf32, #tpu.memory_space<vmem>>, vector<1x1xf32>
    %33 = vector.broadcast %32 : vector<1x1xf32> to vector<8x1xf32>
    %34 = arith.addf %31, %33 : vector<8x1xf32>
    %35 = arith.divf %34, %22 : vector<8x1xf32>
    %cst_22 = arith.constant 1.000000e-03 : f32
    %36 = vector.broadcast %cst_22 : f32 to vector<8x1xf32>
    %37 = arith.addf %35, %36 : vector<8x1xf32>
    %38 = math.rsqrt %37 : vector<8x1xf32>
    %39 = vector.broadcast %38 : vector<8x1xf32> to vector<8x128xf32>
    %40 = arith.mulf %25, %39 : vector<8x128xf32>
    %c0_23 = arith.constant 0 : index
    %c0_24 = arith.constant 0 : index
    %41 = vector.load %arg5[%c0_23, %c0_24] : memref<1x128xf32, #tpu.memory_space<vmem>>, vector<1x128xf32>
    %42 = vector.broadcast %41 : vector<1x128xf32> to vector<8x128xf32>
    %43 = arith.mulf %40, %42 : vector<8x128xf32>
    %44 = vector.broadcast %6 : vector<8x1xf32> to vector<8x128xf32>
    %45 = arith.mulf %43, %44 : vector<8x128xf32>
    %c0_25 = arith.constant 0 : index
    %c0_26 = arith.constant 0 : index
    %c0_27 = arith.constant 0 : index
    %46 = vector.load %arg7[%c0_25, %c0_26, %c0_27] : memref<1x8x128xf32, #tpu.memory_space<vmem>>, vector<1x8x128xf32>
    %47 = vector.shape_cast %46 : vector<1x8x128xf32> to vector<8x128xf32>
    %48 = vector.shape_cast %45 : vector<8x128xf32> to vector<1x8x128xf32>
    tpu.vector_store %arg7[%c0_25, %c0_26, %c0_27], %48 {strides = array<i32>} : memref<1x8x128xf32, #tpu.memory_space<vmem>>, vector<1x8x128xf32>,
    %49 = vector.extract_strided_slice %16 {offsets = [7, 0], sizes = [1, 1], strides = [1, 1]} : vector<8x1xf32> to vector<1x1xf32>
    %c0_28 = arith.constant 0 : index
    %c0_29 = arith.constant 0 : index
    %50 = vector.load %arg8[%c0_28, %c0_29] : memref<1x1xf32, #tpu.memory_space<vmem>>, vector<1x1xf32>
    tpu.vector_store %arg8[%c0_28, %c0_29], %49 {strides = array<i32>} : memref<1x1xf32, #tpu.memory_space<vmem>>, vector<1x1xf32>,
    %51 = vector.extract_strided_slice %20 {offsets = [7, 0], sizes = [1, 1], strides = [1, 1]} : vector<8x1xf32> to vector<1x1xf32>
    %c0_30 = arith.constant 0 : index
    %c0_31 = arith.constant 0 : index
    %52 = vector.load %arg9[%c0_30, %c0_31] : memref<1x1xf32, #tpu.memory_space<vmem>>, vector<1x1xf32>
    tpu.vector_store %arg9[%c0_30, %c0_31], %51 {strides = array<i32>} : memref<1x1xf32, #tpu.memory_space<vmem>>, vector<1x1xf32>,
    %53 = vector.extract_strided_slice %34 {offsets = [7, 0], sizes = [1, 1], strides = [1, 1]} : vector<8x1xf32> to vector<1x1xf32>
    %c0_32 = arith.constant 0 : index
    %c0_33 = arith.constant 0 : index
    %54 = vector.load %arg10[%c0_32, %c0_33] : memref<1x1xf32, #tpu.memory_space<vmem>>, vector<1x1xf32>
    tpu.vector_store %arg10[%c0_32, %c0_33], %53 {strides = array<i32>} : memref<1x1xf32, #tpu.memory_space<vmem>>, vector<1x1xf32>,
    return
  }
  func.func @transform_0(%arg0: i32, %arg1: i32) -> (i32, i32, i32) {
    %c0_i32 = arith.constant 0 : i32
    %c0_i32_0 = arith.constant 0 : i32
    return %arg0, %arg1, %c0_i32 : i32, i32, i32
  }
  func.func @transform_1(%arg0: i32, %arg1: i32) -> (i32, i32, i32) {
    %c0_i32 = arith.constant 0 : i32
    %c0_i32_0 = arith.constant 0 : i32
    return %arg0, %arg1, %c0_i32 : i32, i32, i32
  }
  func.func @transform_2(%arg0: i32, %arg1: i32) -> (i32, i32) {
    %c0_i32 = arith.constant 0 : i32
    %c0_i32_0 = arith.constant 0 : i32
    %c0_i32_1 = arith.constant 0 : i32
    return %c0_i32, %c0_i32_0 : i32, i32
  }
  func.func @transform_3(%arg0: i32, %arg1: i32) -> (i32, i32) {
    %c0_i32 = arith.constant 0 : i32
    %c0_i32_0 = arith.constant 0 : i32
    %c0_i32_1 = arith.constant 0 : i32
    return %c0_i32, %c0_i32_0 : i32, i32
  }
  func.func @transform_4(%arg0: i32, %arg1: i32) -> (i32, i32) {
    %c0_i32 = arith.constant 0 : i32
    %c0_i32_0 = arith.constant 0 : i32
    %c0_i32_1 = arith.constant 0 : i32
    return %c0_i32, %c0_i32_0 : i32, i32
  }
  func.func @transform_5(%arg0: i32, %arg1: i32) -> (i32, i32, i32) {
    %c0_i32 = arith.constant 0 : i32
    %c0_i32_0 = arith.constant 0 : i32
    return %arg0, %arg1, %c0_i32 : i32, i32, i32
  }
}

</mosaic_0001>

<llo_original>
// kernel: tpu_custom_call.1
$region0: #{tpu_custom_call.1}
  #allocation0 [shape = 'u32[]', space=smem, size = 0x4, offset = 0x4, fixed_abs, tag = 'smem constant byte address 0x4 - core index']
  #allocation1 [shape = 'u32[144,128]{1,0:T(1,128)}', space=vmem, size = 0x12000, scoped, tag = 'internal scratch']
  #allocation2 [shape = 'f32[1,1]{1,0:T(1,128)}', space=vmem, size = 0x200, scoped, tag = 'scratch operand']
  #allocation3 [shape = 'f32[1,1]{1,0:T(1,128)}', space=vmem, size = 0x200, scoped, tag = 'scratch operand']
  #allocation4 [shape = 'f32[1,1]{1,0:T(1,128)}', space=vmem, size = 0x200, scoped, tag = 'scratch operand']
  %s0 = inlined_call_operand.vmem [shape: f32[2,16,128], index: 0, kind: input, shape index: {}]
  %s1 = inlined_call_operand.vmem [shape: f32[2,16,1], index: 1, kind: input, shape index: {}]
  %s2 = inlined_call_operand.vmem [shape: f32[8,8], index: 2, kind: input, shape index: {}]
  %s3 = inlined_call_operand.vmem [shape: f32[1,128], index: 3, kind: input, shape index: {}]
  %s4 = inlined_call_operand.vmem [shape: f32[1,128], index: 4, kind: input, shape index: {}]
  %s5 = inlined_call_operand.hbm [shape: f32[2,16,128], index: 5, kind: output, shape index: {}]
  %s6 = sld [smem:[#allocation0]]
  $region57: #{tpu_custom_call.1} parent=0
    _
  %s8 = ssub.s32 1, %s6
  %s9 = scalar_select 0, %s8, %s6
  $region1: #{tpu_custom_call.1} parent=0
    #allocation5 [shape = 'u8[8192]{0}', space=vmem, size = 0x2000, scoped, tag = 'output window, operand 0']
    #allocation6 [shape = 's32[2]{0}', space=sflag, size = 0x8, scoped, tag = 'scoped memory for tpu_custom_call.1']
    %10 = vsyncpa [#allocation6], 0
    %s11 = scalar_lea.sflag [#allocation6], 1
    %12 = vsyncpa %s11, 0
    loop: start=0, step=1, limit=6
    $region2: #{tpu_custom_call.1} parent=1 // loop_pre_header
      _
    $region3: #{tpu_custom_call.1} parent=1 // loop_header
      %s14 = sphi 0, %s18
      %p15 = scmp.ge.s32.totalorder %s14, 6
      %s21 = sphi 0, %s33
      %s22 = sphi 0, %s29
      %s23 = sphi 0, %s21
      %s24 = sphi 0, %s22
      %s25 = sphi 0, %s23
      %s26 = sphi 0, %s24
      %s38 = sphi 0, %s40
      %s41 = sphi 0, %s38
      %s42 = sphi 0, %s41
      %s58 = sphi 0, %s42
      %s66 = sphi 0, %s68
      %s69 = sphi 0, %s66
      %s70 = sphi 0, %s69
      %s86 = sphi 0, %s70
      %s90 = sphi 0, %s90
      %s92 = sphi 0, %s90
      %s93 = sphi 0, %s92
      %s107 = sphi 0, %s93
      %s111 = sphi 0, %s111
      %s113 = sphi 0, %s111
      %s114 = sphi 0, %s113
      %s128 = sphi 0, %s114
      %s132 = sphi 0, %s132
      %s134 = sphi 0, %s132
      %s135 = sphi 0, %s134
      %s149 = sphi 0, %s135
      %s157 = sphi 0, %s159
      %s160 = sphi 0, %s157
      %s161 = sphi 0, %s160
      %s177 = sphi 0, %s161
    $region4: #{tpu_custom_call.1} parent=1 // loop_header_branch
      %17 = sbr.rel (%p15) target = $region8
    $region5: #{tpu_custom_call.1} parent=1 // loop_body
      %s19 = ssub.s32 %s14, 1
      %s20 = ssub.s32 %s14, 2
      %s27 = sadd.s32 1, %s22
      %p28 = scmp.ge.s32.totalorder %s27, 2
      %s29 = scalar_select %p28, 0, %s27
      %s30 = sadd.s32 1, %s21
      %s31 = scalar_select %p28, %s30, %s21
      %p32 = scmp.ge.s32.totalorder %s31, 2
      %s33 = scalar_select %p32, 0, %s31
      %s34 = ssub.s32 %s21, %s33
      %s35 = ssub.s32 %s22, %s29
      %s36 = sor.u32 %s34, %s35
      %p37 = scmp.eq.s32.totalorder %s36, 0
      %s39 = sadd.s32 %s38, 1
      %s40 = scalar_select %p37, %s38, %s39
      %p43 = pneg %p37
      %p44 = scmp.eq.s32.totalorder %s14, 3
      %p45 = por %p43, %p44
      %p46 = scmp.ne.s32.totalorder %s38, %s41
      %p47 = scmp.eq.s32.totalorder %s14, 0
      %p48 = por %p46, %p47
      %p49 = scmp.ne.s32.totalorder %s38, %s41
      %p50 = scmp.eq.s32.totalorder %s19, 3
      %p51 = por %p49, %p50
      %p52 = scmp.ne.s32.totalorder %s41, %s42
      %p53 = scmp.eq.s32.totalorder %s19, 0
      %p54 = por %p52, %p53
      %p55 = scmp.ne.s32.totalorder %s41, %s42
      %p56 = scmp.eq.s32.totalorder %s20, 3
      %p57 = por %p55, %p56
      %p59 = scmp.ne.s32.totalorder %s42, %s58
      %p60 = scmp.eq.s32.totalorder %s20, 0
      %p61 = por %p59, %p60
      %s62 = ssub.s32 %s21, %s33
      %s63 = ssub.s32 %s22, %s29
      %s64 = sor.u32 %s62, %s63
      %p65 = scmp.eq.s32.totalorder %s64, 0
      %s67 = sadd.s32 %s66, 1
      %s68 = scalar_select %p65, %s66, %s67
      %p71 = pneg %p65
      %p72 = scmp.eq.s32.totalorder %s14, 3
      %p73 = por %p71, %p72
      %p74 = scmp.ne.s32.totalorder %s66, %s69
      %p75 = scmp.eq.s32.totalorder %s14, 0
      %p76 = por %p74, %p75
      %p77 = scmp.ne.s32.totalorder %s66, %s69
      %p78 = scmp.eq.s32.totalorder %s19, 3
      %p79 = por %p77, %p78
      %p80 = scmp.ne.s32.totalorder %s69, %s70
      %p81 = scmp.eq.s32.totalorder %s19, 0
      %p82 = por %p80, %p81
      %p83 = scmp.ne.s32.totalorder %s69, %s70
      %p84 = scmp.eq.s32.totalorder %s20, 3
      %p85 = por %p83, %p84
      %p87 = scmp.ne.s32.totalorder %s70, %s86
      %p88 = scmp.eq.s32.totalorder %s20, 0
      %p89 = por %p87, %p88
      %s91 = sadd.s32 %s90, 1
      %p94 = scmp.eq.s32.totalorder %s14, 3
      %p95 = scmp.ne.s32.totalorder %s90, %s92
      %p96 = scmp.eq.s32.totalorder %s14, 0
      %p97 = por %p95, %p96
      %p98 = scmp.ne.s32.totalorder %s90, %s92
      %p99 = scmp.eq.s32.totalorder %s19, 3
      %p100 = por %p98, %p99
      %p101 = scmp.ne.s32.totalorder %s92, %s93
      %p102 = scmp.eq.s32.totalorder %s19, 0
      %p103 = por %p101, %p102
      %p104 = scmp.ne.s32.totalorder %s92, %s93
      %p105 = scmp.eq.s32.totalorder %s20, 3
      %p106 = por %p104, %p105
      %p108 = scmp.ne.s32.totalorder %s93, %s107
      %p109 = scmp.eq.s32.totalorder %s20, 0
      %p110 = por %p108, %p109
      %s112 = sadd.s32 %s111, 1
      %p115 = scmp.eq.s32.totalorder %s14, 3
      %p116 = scmp.ne.s32.totalorder %s111, %s113
      %p117 = scmp.eq.s32.totalorder %s14, 0
      %p118 = por %p116, %p117
      %p119 = scmp.ne.s32.totalorder %s111, %s113
      %p120 = scmp.eq.s32.totalorder %s19, 3
      %p121 = por %p119, %p120
      %p122 = scmp.ne.s32.totalorder %s113, %s114
      %p123 = scmp.eq.s32.totalorder %s19, 0
      %p124 = por %p122, %p123
      %p125 = scmp.ne.s32.totalorder %s113, %s114
      %p126 = scmp.eq.s32.totalorder %s20, 3
      %p127 = por %p125, %p126
      %p129 = scmp.ne.s32.totalorder %s114, %s128
      %p130 = scmp.eq.s32.totalorder %s20, 0
      %p131 = por %p129, %p130
      %s133 = sadd.s32 %s132, 1
      %p136 = scmp.eq.s32.totalorder %s14, 3
      %p137 = scmp.ne.s32.totalorder %s132, %s134
      %p138 = scmp.eq.s32.totalorder %s14, 0
      %p139 = por %p137, %p138
      %p140 = scmp.ne.s32.totalorder %s132, %s134
      %p141 = scmp.eq.s32.totalorder %s19, 3
      %p142 = por %p140, %p141
      %p143 = scmp.ne.s32.totalorder %s134, %s135
      %p144 = scmp.eq.s32.totalorder %s19, 0
      %p145 = por %p143, %p144
      %p146 = scmp.ne.s32.totalorder %s134, %s135
      %p147 = scmp.eq.s32.totalorder %s20, 3
      %p148 = por %p146, %p147
      %p150 = scmp.ne.s32.totalorder %s135, %s149
      %p151 = scmp.eq.s32.totalorder %s20, 0
      %p152 = por %p150, %p151
      %s153 = ssub.s32 %s21, %s33
      %s154 = ssub.s32 %s22, %s29
      %s155 = sor.u32 %s153, %s154
      %p156 = scmp.eq.s32.totalorder %s155, 0
      %s158 = sadd.s32 %s157, 1
      %s159 = scalar_select %p156, %s157, %s158
      %p162 = pneg %p156
      %p163 = scmp.eq.s32.totalorder %s14, 3
      %p164 = por %p162, %p163
      %p165 = scmp.ne.s32.totalorder %s157, %s160
      %p166 = scmp.eq.s32.totalorder %s14, 0
      %p167 = por %p165, %p166
      %p168 = scmp.ne.s32.totalorder %s157, %s160
      %p169 = scmp.eq.s32.totalorder %s19, 3
      %p170 = por %p168, %p169
      %p171 = scmp.ne.s32.totalorder %s160, %s161
      %p172 = scmp.eq.s32.totalorder %s19, 0
      %p173 = por %p171, %p172
      %p174 = scmp.ne.s32.totalorder %s160, %s161
      %p175 = scmp.eq.s32.totalorder %s20, 3
      %p176 = por %p174, %p175
      %p178 = scmp.ne.s32.totalorder %s161, %s177
      %p179 = scmp.eq.s32.totalorder %s20, 0
      %p180 = por %p178, %p179
      %p181 = scmp.le.s32.totalorder 1, %s14
      %p182 = scmp.lt.s32.totalorder %s14, 5
      %p183 = pnand %p181, %p182
      %p184 = pneg %p183
      // Predicated region
      $region9: #{tpu_custom_call.1} parent=5 // pred_check
        _
      $region10: #{tpu_custom_call.1} parent=5 // pred_check_branch
        %186 = sbr.rel (%p183) target = $region12
      $region11: #{tpu_custom_call.1} parent=5 // pred_region
        %s187 = ssub.s32 %s14, 1
        // Predicated region
        $region13: #{tpu_custom_call.1} parent=11 // pred_check
          %p188 = pneg %p103
        $region14: #{tpu_custom_call.1} parent=11 // pred_check_branch
          %190 = sbr.rel (%p188) target = $region16
        $region15: #{tpu_custom_call.1} parent=11 // pred_region
          _
        $region16: #{tpu_custom_call.1} parent=11 // pred_fallthru
          _
        // Predicated region
        $region17: #{tpu_custom_call.1} parent=11 // pred_check
          %p191 = pneg %p124
        $region18: #{tpu_custom_call.1} parent=11 // pred_check_branch
          %193 = sbr.rel (%p191) target = $region20
        $region19: #{tpu_custom_call.1} parent=11 // pred_region
          _
        $region20: #{tpu_custom_call.1} parent=11 // pred_fallthru
          _
        // Predicated region
        $region21: #{tpu_custom_call.1} parent=11 // pred_check
          %p194 = pneg %p145
        $region22: #{tpu_custom_call.1} parent=11 // pred_check_branch
          %196 = sbr.rel (%p194) target = $region24
        $region23: #{tpu_custom_call.1} parent=11 // pred_region
          _
        $region24: #{tpu_custom_call.1} parent=11 // pred_fallthru
          _
      $region12: #{tpu_custom_call.1} parent=5 // pred_fallthru
        _
      %p197 = scmp.lt.s32.totalorder %s14, 4
      // Predicated region
      $region25: #{tpu_custom_call.1} parent=5 // pred_check
        %p198 = pneg %p197
      $region26: #{tpu_custom_call.1} parent=5 // pred_check_branch
        %200 = sbr.rel (%p198) target = $region28
      $region27: #{tpu_custom_call.1} parent=5 // pred_region
        // Predicated region
        $region29: #{tpu_custom_call.1} parent=27 // pred_check
          %p201 = pneg %p48
        $region30: #{tpu_custom_call.1} parent=27 // pred_check_branch
          %203 = sbr.rel (%p201) target = $region32
        $region31: #{tpu_custom_call.1} parent=27 // pred_region
          %p204 = scmp.lt.s32.totalorder %s21, 1
          %s205 = scalar_select %p204, %s21, 1
          %p206 = scmp.lt.s32.totalorder %s22, 1
          %s207 = scalar_select %p206, %s22, 1
          %s208 = smul.addr %s205, 2
          %s209 = sadd.s32 %s207, %s208
          %s210 = smul.addr %s209, 8
          %s211 = scalar_lea.vmem %s0, %s210
        $region32: #{tpu_custom_call.1} parent=27 // pred_fallthru
          _
        // Predicated region
        $region33: #{tpu_custom_call.1} parent=27 // pred_check
          %p212 = pneg %p76
        $region34: #{tpu_custom_call.1} parent=27 // pred_check_branch
          %214 = sbr.rel (%p212) target = $region36
        $region35: #{tpu_custom_call.1} parent=27 // pred_region
          %p215 = scmp.lt.s32.totalorder %s21, 1
          %s216 = scalar_select %p215, %s21, 1
          %p217 = scmp.lt.s32.totalorder %s22, 1
          %s218 = scalar_select %p217, %s22, 1
          %s219 = smul.addr %s216, 2
          %s220 = sadd.s32 %s218, %s219
          %s221 = smul.addr %s220, 8
          %s222 = scalar_lea.vmem %s1, %s221
        $region36: #{tpu_custom_call.1} parent=27 // pred_fallthru
          _
      $region28: #{tpu_custom_call.1} parent=5 // pred_fallthru
        _
      %p223 = scmp.le.s32.totalorder 1, %s14
      %p224 = scmp.lt.s32.totalorder %s14, 5
      %p225 = pnand %p223, %p224
      %p226 = pneg %p225
      // Predicated region
      $region37: #{tpu_custom_call.1} parent=5 // pred_check
        _
      $region38: #{tpu_custom_call.1} parent=5 // pred_check_branch
        %228 = sbr.rel (%p225) target = $region40
      $region39: #{tpu_custom_call.1} parent=5 // pred_region
        %s229 = ssub.s32 %s14, 1
        %p230 = scmp.lt.s32.totalorder %s23, 1
        %s231 = scalar_select %p230, %s23, 1
        %p232 = scmp.lt.s32.totalorder %s24, 1
        %s233 = scalar_select %p232, %s24, 1
        %s234 = smul.addr %s231, 2
        %s235 = sadd.s32 %s233, %s234
        %s236 = smul.addr %s235, 8
        %s237 = scalar_lea.vmem %s0, %s236
        %p238 = pneg %p54
        %p239 = pneg %p51
        %p240 = scmp.lt.s32.totalorder %s23, 1
        %s241 = scalar_select %p240, %s23, 1
        %p242 = scmp.lt.s32.totalorder %s24, 1
        %s243 = scalar_select %p242, %s24, 1
        %s244 = smul.addr %s241, 2
        %s245 = sadd.s32 %s243, %s244
        %s246 = smul.addr %s245, 8
        %s247 = scalar_lea.vmem %s1, %s246
        %p248 = pneg %p82
        %p249 = pneg %p79
        %p250 = pneg %p103
        %p251 = pneg %p100
        %p252 = pneg %p124
        %p253 = pneg %p121
        %p254 = pneg %p145
        %p255 = pneg %p142
        %p256 = pneg %p173
        %p257 = pneg %p170
        %s258 = sand.u32 %s160, 1
        %s259 = scalar_lea.sflag [#allocation6], %s258
        %s260 = sand.u32 %s160, 1
        %s261 = smul.addr %s260, 8
        %s262 = scalar_lea.vmem [#allocation5], %s261
        %p263 = scmp.lt.s32.totalorder %s23, 1
        %s264 = scalar_select %p263, %s23, 1
        %p265 = scmp.lt.s32.totalorder %s24, 1
        %s266 = scalar_select %p265, %s24, 1
        %s267 = smul.addr %s264, 2
        %s268 = sadd.s32 %s266, %s267
        %s269 = smul.addr %s268, 8
        %s270 = scalar_lea.vmem %s0, %s269
        %p271 = scmp.lt.s32.totalorder %s23, 1
        %s272 = scalar_select %p271, %s23, 1
        %p273 = scmp.lt.s32.totalorder %s24, 1
        %s274 = scalar_select %p273, %s24, 1
        %s275 = smul.addr %s272, 2
        %s276 = sadd.s32 %s274, %s275
        %s277 = smul.addr %s276, 8
        %s278 = scalar_lea.vmem %s1, %s277
        %p279 = scmp.eq.s32.totalorder %s24, 0
        // Predicated region
        $region41: #{tpu_custom_call.1} parent=39 // pred_check
          %p280 = pneg %p279
        $region42: #{tpu_custom_call.1} parent=39 // pred_check_branch
          %282 = sbr.rel (%p280) target = $region44
        $region43: #{tpu_custom_call.1} parent=39 // pred_region
          %vm283 = vcmask 0
          %284 = vst.msk [vmem:[#allocation2] sm:$0x1] %vm283, 0.0
          %285 = vst.msk [vmem:[#allocation3] sm:$0x1] %vm283, 0.0
          %286 = vst.msk [vmem:[#allocation4] sm:$0x1] %vm283, 0.0
        $region44: #{tpu_custom_call.1} parent=39 // pred_fallthru
          _
        %v287 = vld [vmem:[%s270] sm:$0xff]
        %v288 = vld [vmem:[%s278] sm:$0xff]
        %v289 = vld [vmem:[%s2] sm:$0xff]
        %v290 = vld [vmem:[%s4] sm:$0x1]
        %291 = vadd.xlane.f32.xlu0 %v287
        %v292 = vpop.xlane.xlu0 %291
        %v293 = vmul.f32 %v288, 32.0
        %v294 = vld [vmem:[#allocation2] sm:$0x1]
        %v296 = vlaneseq
        %v297 = vshrl.u32 %v296, 7
        %v298 = vsub.s32 0, %v297
        %v299 = vrot.slane %v294, %v298
        %vm301 = vcmask 64512
        %v303 = vsel %vm301, %v289, 0
        %305 = vmatprep.subr.mxu0 0.0
        %306 = vmatpush1.msra.mxu0 %v292
        %307 = vmatprep.subr.mxu0 0.0
        %308 = vmatpush1.msra.mxu0 0.0
        %309 = vmatprep.subr.mxu0 0.0
        %310 = vmatpush1.msra.mxu0 0.0
        %311 = vmatprep.subr.mxu0 0.0
        %312 = vmatpush1.msra.mxu0 0.0
        %313 = vmatprep.subr.mxu0 0.0
        %314 = vmatpush1.msra.mxu0 0.0
        %315 = vmatprep.subr.mxu0 0.0
        %316 = vmatpush1.msra.mxu0 0.0
        %317 = vmatprep.subr.mxu0 0.0
        %318 = vmatpush1.msra.mxu0 0.0
        %319 = vmatprep.subr.mxu0 0.0
        %320 = vmatpush1.msra.mxu0 0.0
        %321 = vmatprep.subr.mxu0 0.0
        %322 = vmatpush1.msra.mxu0 0.0
        %323 = vmatprep.subr.mxu0 0.0
        %324 = vmatpush1.msra.mxu0 0.0
        %325 = vmatprep.subr.mxu0 0.0
        %326 = vmatpush1.msra.mxu0 0.0
        %327 = vmatprep.subr.mxu0 0.0
        %328 = vmatpush1.msra.mxu0 0.0
        %329 = vmatprep.subr.mxu0 0.0
        %330 = vmatpush1.msra.mxu0 0.0
        %331 = vmatprep.subr.mxu0 0.0
        %332 = vmatpush1.msra.mxu0 0.0
        %333 = vmatprep.subr.mxu0 0.0
        %334 = vmatpush1.msra.mxu0 0.0
        %335 = vmatprep.subr.mxu0 0.0
        %336 = vmatpush1.msra.mxu0 0.0
        %337 = vmatprep.subr.mxu0 0.0
        %338 = vmatpush1.msra.mxu0 0.0
        %339 = vmatprep.subr.mxu0 0.0
        %340 = vmatpush1.msra.mxu0 0.0
        %341 = vmatprep.subr.mxu0 0.0
        %342 = vmatpush1.msra.mxu0 0.0
        %343 = vmatprep.subr.mxu0 0.0
        %344 = vmatpush1.msra.mxu0 0.0
        %345 = vmatprep.subr.mxu0 0.0
        %346 = vmatpush1.msra.mxu0 0.0
        %347 = vmatprep.subr.mxu0 0.0
        %348 = vmatpush1.msra.mxu0 0.0
        %349 = vmatprep.subr.mxu0 0.0
        %350 = vmatpush1.msra.mxu0 0.0
        %351 = vmatprep.subr.mxu0 0.0
        %352 = vmatpush1.msra.mxu0 0.0
        %353 = vmatprep.subr.mxu0 0.0
        %354 = vmatpush1.msra.mxu0 0.0
        %355 = vmatprep.subr.mxu0 0.0
        %356 = vmatpush1.msra.mxu0 0.0
        %357 = vmatprep.subr.mxu0 0.0
        %358 = vmatpush1.msra.mxu0 0.0
        %359 = vmatprep.subr.mxu0 0.0
        %360 = vmatpush1.msra.mxu0 0.0
        %361 = vmatprep.subr.mxu0 0.0
        %362 = vmatpush1.msra.mxu0 0.0
        %363 = vmatprep.subr.mxu0 0.0
        %364 = vmatpush1.msra.mxu0 0.0
        %365 = vmatprep.subr.mxu0 0.0
        %366 = vmatpush1.msra.mxu0 0.0
        %367 = vmatprep.subr.mxu0 0.0
        %368 = vmatpush1.msra.mxu0 0.0
        %369 = vmatprep.mubr.f32.mxu0 0.0
        %370 = vmatmul.mubr.f32.gmra.mrb[0].mxu0 %v303
        %v371 = vpop.f32.mrb[0].mxu0
        %v372 = vadd.f32 %v299, %v371
        %v373 = vpop.f32.mrb[0].mxu0
        %374 = vdwg.mxu0
        %v375 = vld [vmem:[#allocation3] sm:$0x1]
        %v377 = vlaneseq
        %v378 = vshrl.u32 %v377, 7
        %v379 = vsub.s32 0, %v378
        %v380 = vrot.slane %v375, %v379
        %382 = vmatprep.subr.mxu0 0.0
        %383 = vmatpush1.msra.mxu0 %v293
        %384 = vmatprep.subr.mxu0 0.0
        %385 = vmatpush1.msra.mxu0 0.0
        %386 = vmatprep.subr.mxu0 0.0
        %387 = vmatpush1.msra.mxu0 0.0
        %388 = vmatprep.subr.mxu0 0.0
        %389 = vmatpush1.msra.mxu0 0.0
        %390 = vmatprep.subr.mxu0 0.0
        %391 = vmatpush1.msra.mxu0 0.0
        %392 = vmatprep.subr.mxu0 0.0
        %393 = vmatpush1.msra.mxu0 0.0
        %394 = vmatprep.subr.mxu0 0.0
        %395 = vmatpush1.msra.mxu0 0.0
        %396 = vmatprep.subr.mxu0 0.0
        %397 = vmatpush1.msra.mxu0 0.0
        %398 = vmatprep.subr.mxu0 0.0
        %399 = vmatpush1.msra.mxu0 0.0
        %400 = vmatprep.subr.mxu0 0.0
        %401 = vmatpush1.msra.mxu0 0.0
        %402 = vmatprep.subr.mxu0 0.0
        %403 = vmatpush1.msra.mxu0 0.0
        %404 = vmatprep.subr.mxu0 0.0
        %405 = vmatpush1.msra.mxu0 0.0
        %406 = vmatprep.subr.mxu0 0.0
        %407 = vmatpush1.msra.mxu0 0.0
        %408 = vmatprep.subr.mxu0 0.0
        %409 = vmatpush1.msra.mxu0 0.0
        %410 = vmatprep.subr.mxu0 0.0
        %411 = vmatpush1.msra.mxu0 0.0
        %412 = vmatprep.subr.mxu0 0.0
        %413 = vmatpush1.msra.mxu0 0.0
        %414 = vmatprep.subr.mxu0 0.0
        %415 = vmatpush1.msra.mxu0 0.0
        %416 = vmatprep.subr.mxu0 0.0
        %417 = vmatpush1.msra.mxu0 0.0
        %418 = vmatprep.subr.mxu0 0.0
        %419 = vmatpush1.msra.mxu0 0.0
        %420 = vmatprep.subr.mxu0 0.0
        %421 = vmatpush1.msra.mxu0 0.0
        %422 = vmatprep.subr.mxu0 0.0
        %423 = vmatpush1.msra.mxu0 0.0
        %424 = vmatprep.subr.mxu0 0.0
        %425 = vmatpush1.msra.mxu0 0.0
        %426 = vmatprep.subr.mxu0 0.0
        %427 = vmatpush1.msra.mxu0 0.0
        %428 = vmatprep.subr.mxu0 0.0
        %429 = vmatpush1.msra.mxu0 0.0
        %430 = vmatprep.subr.mxu0 0.0
        %431 = vmatpush1.msra.mxu0 0.0
        %432 = vmatprep.subr.mxu0 0.0
        %433 = vmatpush1.msra.mxu0 0.0
        %434 = vmatprep.subr.mxu0 0.0
        %435 = vmatpush1.msra.mxu0 0.0
        %436 = vmatprep.subr.mxu0 0.0
        %437 = vmatpush1.msra.mxu0 0.0
        %438 = vmatprep.subr.mxu0 0.0
        %439 = vmatpush1.msra.mxu0 0.0
        %440 = vmatprep.subr.mxu0 0.0
        %441 = vmatpush1.msra.mxu0 0.0
        %442 = vmatprep.subr.mxu0 0.0
        %443 = vmatpush1.msra.mxu0 0.0
        %444 = vmatprep.subr.mxu0 0.0
        %445 = vmatpush1.msra.mxu0 0.0
        %446 = vmatprep.mubr.f32.mxu0 0.0
        %447 = vmatmul.mubr.f32.gmra.mrb[0].mxu0 %v303
        %v448 = vpop.f32.mrb[0].mxu0
        %v449 = vadd.f32 %v380, %v448
        %v450 = vpop.f32.mrb[0].mxu0
        %451 = vdwg.mxu0
        %v452 = vmax.f32 %v449, 1.0
        %v453 = vrcp.pop %v452
        %v454 = vmul.f32 %v372, %v453
        %456 = vset.pattern.permute.xlu0 0
        %457 = vperm.xlu0 %456, %v454
        %v458 = vpop.permute.xlu0 %457
        %v460 = vsub.f32 %v287, %v458
        %v462 = vlaneseq
        %v463 = vshrl.u32 %v462, 7
        %v464 = vsub.s32 0, %v463
        %v465 = vrot.slane %v290, %v464
        %v467 = vmul.f32 %v460, %v465
        %v468 = vmul.f32 %v467, %v467
        %469 = vadd.xlane.f32.xlu0 %v468
        %v470 = vpop.xlane.xlu0 %469
        %v471 = vld [vmem:[#allocation4] sm:$0x1]
        %v473 = vlaneseq
        %v474 = vshrl.u32 %v473, 7
        %v475 = vsub.s32 0, %v474
        %v476 = vrot.slane %v471, %v475
        %478 = vmatprep.subr.mxu0 0.0
        %479 = vmatpush1.msra.mxu0 %v470
        %480 = vmatprep.subr.mxu0 0.0
        %481 = vmatpush1.msra.mxu0 0.0
        %482 = vmatprep.subr.mxu0 0.0
        %483 = vmatpush1.msra.mxu0 0.0
        %484 = vmatprep.subr.mxu0 0.0
        %485 = vmatpush1.msra.mxu0 0.0
        %486 = vmatprep.subr.mxu0 0.0
        %487 = vmatpush1.msra.mxu0 0.0
        %488 = vmatprep.subr.mxu0 0.0
        %489 = vmatpush1.msra.mxu0 0.0
        %490 = vmatprep.subr.mxu0 0.0
        %491 = vmatpush1.msra.mxu0 0.0
        %492 = vmatprep.subr.mxu0 0.0
        %493 = vmatpush1.msra.mxu0 0.0
        %494 = vmatprep.subr.mxu0 0.0
        %495 = vmatpush1.msra.mxu0 0.0
        %496 = vmatprep.subr.mxu0 0.0
        %497 = vmatpush1.msra.mxu0 0.0
        %498 = vmatprep.subr.mxu0 0.0
        %499 = vmatpush1.msra.mxu0 0.0
        %500 = vmatprep.subr.mxu0 0.0
        %501 = vmatpush1.msra.mxu0 0.0
        %502 = vmatprep.subr.mxu0 0.0
        %503 = vmatpush1.msra.mxu0 0.0
        %504 = vmatprep.subr.mxu0 0.0
        %505 = vmatpush1.msra.mxu0 0.0
        %506 = vmatprep.subr.mxu0 0.0
        %507 = vmatpush1.msra.mxu0 0.0
        %508 = vmatprep.subr.mxu0 0.0
        %509 = vmatpush1.msra.mxu0 0.0
        %510 = vmatprep.subr.mxu0 0.0
        %511 = vmatpush1.msra.mxu0 0.0
        %512 = vmatprep.subr.mxu0 0.0
        %513 = vmatpush1.msra.mxu0 0.0
        %514 = vmatprep.subr.mxu0 0.0
        %515 = vmatpush1.msra.mxu0 0.0
        %516 = vmatprep.subr.mxu0 0.0
        %517 = vmatpush1.msra.mxu0 0.0
        %518 = vmatprep.subr.mxu0 0.0
        %519 = vmatpush1.msra.mxu0 0.0
        %520 = vmatprep.subr.mxu0 0.0
        %521 = vmatpush1.msra.mxu0 0.0
        %522 = vmatprep.subr.mxu0 0.0
        %523 = vmatpush1.msra.mxu0 0.0
        %524 = vmatprep.subr.mxu0 0.0
        %525 = vmatpush1.msra.mxu0 0.0
        %526 = vmatprep.subr.mxu0 0.0
        %527 = vmatpush1.msra.mxu0 0.0
        %528 = vmatprep.subr.mxu0 0.0
        %529 = vmatpush1.msra.mxu0 0.0
        %530 = vmatprep.subr.mxu0 0.0
        %531 = vmatpush1.msra.mxu0 0.0
        %532 = vmatprep.subr.mxu0 0.0
        %533 = vmatpush1.msra.mxu0 0.0
        %534 = vmatprep.subr.mxu0 0.0
        %535 = vmatpush1.msra.mxu0 0.0
        %536 = vmatprep.subr.mxu0 0.0
        %537 = vmatpush1.msra.mxu0 0.0
        %538 = vmatprep.subr.mxu0 0.0
        %539 = vmatpush1.msra.mxu0 0.0
        %540 = vmatprep.subr.mxu0 0.0
        %541 = vmatpush1.msra.mxu0 0.0
        %542 = vmatprep.mubr.f32.mxu0 0.0
        %543 = vmatmul.mubr.f32.gmra.mrb[0].mxu0 %v303
        %v544 = vpop.f32.mrb[0].mxu0
        %v545 = vadd.f32 %v476, %v544
        %v546 = vpop.f32.mrb[0].mxu0
        %547 = vdwg.mxu0
        %v548 = vmul.f32 %v545, %v453
        %v549 = vadd.f32 %v548, 0.001
        %v550 = vrsqrt.pop %v549
        %552 = vset.pattern.permute.xlu0 0
        %553 = vperm.xlu0 %552, %v550
        %v554 = vpop.permute.xlu0 %553
        %v556 = vmul.f32 %v460, %v554
        %v557 = vld [vmem:[%s3] sm:$0x1]
        %v559 = vlaneseq
        %v560 = vshrl.u32 %v559, 7
        %v561 = vsub.s32 0, %v560
        %v562 = vrot.slane %v557, %v561
        %v564 = vmul.f32 %v556, %v562
        %566 = vset.pattern.permute.xlu0 0
        %567 = vperm.xlu0 %566, %v288
        %v568 = vpop.permute.xlu0 %567
        %v570 = vmul.f32 %v564, %v568
        %571 = vst [vmem:[%s262] sm:$0xff] %v570
        %vm572 = vcmask 7175
        %573 = vst.msk [vmem:[#allocation2 - $0x7] sm:$0x80] %vm572, %v372
        %574 = vst.msk [vmem:[#allocation3 - $0x7] sm:$0x80] %vm572, %v449
        %575 = vst.msk [vmem:[#allocation4 - $0x7] sm:$0x80] %vm572, %v545
        %s576 = sand.u32 %s160, 1
        %s577 = scalar_lea.sflag [#allocation6], %s576
        %s578 = sand.u32 %s160, 1
        %s579 = smul.addr %s578, 8
        %s580 = scalar_lea.vmem [#allocation5], %s579
        // Predicated region
        $region45: #{tpu_custom_call.1} parent=39 // pred_check
          %p581 = pneg %p170
        $region46: #{tpu_custom_call.1} parent=39 // pred_check_branch
          %583 = sbr.rel (%p581) target = $region48
        $region47: #{tpu_custom_call.1} parent=39 // pred_region
          %s585 = ssub.s32 128, 128
          %586 = vsyncadd %s577, %s585
          %s587 = smul.addr %s23, 2
          %s588 = sadd.s32 %s24, %s587
          %s589 = smul.addr %s588, 128
          %s590 = scalar_lea.hbm %s5, %s589
          %s592 = sshll.u32 %s580, 4
          %s593 = int_to_ptr.vmem [resolvable:$true] %s592
          %595 = dma.vmem_to_hbm [thread:$0]  %s593, 128, %s590, %s577
        $region48: #{tpu_custom_call.1} parent=39 // pred_fallthru
          _
      $region40: #{tpu_custom_call.1} parent=5 // pred_fallthru
        _
      %p596 = scmp.le.s32.totalorder 2, %s14
      // Predicated region
      $region49: #{tpu_custom_call.1} parent=5 // pred_check
        %p597 = pneg %p596
      $region50: #{tpu_custom_call.1} parent=5 // pred_check_branch
        %599 = sbr.rel (%p597) target = $region52
      $region51: #{tpu_custom_call.1} parent=5 // pred_region
        %s600 = ssub.s32 %s14, 2
        // Predicated region
        $region53: #{tpu_custom_call.1} parent=51 // pred_check
          %p601 = pneg %p176
        $region54: #{tpu_custom_call.1} parent=51 // pred_check_branch
          %603 = sbr.rel (%p601) target = $region56
        $region55: #{tpu_custom_call.1} parent=51 // pred_region
          %s604 = sand.u32 %s161, 1
          %s605 = scalar_lea.sflag [#allocation6], %s604
          %s606 = sand.u32 %s161, 1
          %s607 = smul.addr %s606, 8
          %s608 = scalar_lea.vmem [#allocation5], %s607
          %609 = dma.done %s605, 128
        $region56: #{tpu_custom_call.1} parent=51 // pred_fallthru
          _
      $region52: #{tpu_custom_call.1} parent=5 // pred_fallthru
        _
    $region6: #{tpu_custom_call.1} parent=1 // loop_footer
      %s18 = sadd.s32 1, %s14
    $region7: #{tpu_custom_call.1} parent=1 // loop_footer_branch
      %13 = sbr.rel target = $region3
    $region8: #{tpu_custom_call.1} parent=1 // loop_exit
      _
    %610 = vsyncpa [#allocation6], 1
    %s611 = scalar_lea.sflag [#allocation6], 1
    %612 = vsyncpa %s611, 1

</llo_original>
